<compile_context>
chip_gen: v5e
topology: v5e:2x2
jax: 0.10.0
libtpu: 0.0.40
codegen_flags: <defaults>
</compile_context>

<pallas_src>
import functools

import jax
import jax.numpy as jnp
from jax.experimental import pallas as pl
from jax.experimental.pallas import tpu as pltpu


HIDDEN_PAD = 128   # hidden width padded to a native MXU / lane tile
OUT_PAD = 128      # lane-dense fused output block (logits cols + 1 reward col)


# ----------------------------------------------------------------------------
# Pallas kernel: fused MLP + handcrafted-reward, one lane-dense output
# ----------------------------------------------------------------------------
def _disc_kernel(obs_ref, act_ref,
                 w1o_ref, w1a_ref, b1_ref,
                 w2_ref, b2_ref,
                 wo_ref, bo_ref,
                 out_ref, *, output_dim):
    """Output block layout (OUT_PAD lanes):
         cols [0, output_dim)       -> trainable logits
         col  output_dim            -> handcrafted reward r(s, a) = -||a||^2
         cols (output_dim, OUT_PAD) -> zero padding
    """
    obs = obs_ref[...]                                          # (TILE_B, obs_dim) bf16
    act = act_ref[...]                                          # (TILE_B, act_dim) f32

    # fc1: split weight avoids the concat(obs, act) in the wrapper.
    h1 = (jnp.dot(obs, w1o_ref[...], preferred_element_type=jnp.float32)
          + jnp.dot(act.astype(w1a_ref.dtype), w1a_ref[...],
                    preferred_element_type=jnp.float32)
          + b1_ref[...])
    h1 = jnp.maximum(h1, 0.0)                                   # ReLU (f32, VPU)

    h2 = jnp.dot(h1.astype(w2_ref.dtype), w2_ref[...],
                 preferred_element_type=jnp.float32) + b2_ref[...]
    h2 = jnp.maximum(h2, 0.0)                                   # ReLU

    logits = jnp.dot(h2.astype(wo_ref.dtype), wo_ref[...],
                     preferred_element_type=jnp.float32) + bo_ref[...]   # (TILE_B, OUT_PAD)

    # Handcrafted reward: f32 reduction (XLU), matches torch's f32 math.
    # TODO(synk): reward_fn is hard-coded as r(s, a) = -||a||^2; the original
    # module allows a distinct callable per handcraft index.
    rew = -jnp.sum(act * act, axis=-1, keepdims=True)           # (TILE_B, 1)

    # Padding cols of wo/bo are zero, so logits is 0 outside [0, output_dim);
    # a single select drops the reward into its column with no scatter.
    col = jax.lax.broadcasted_iota(jnp.int32, logits.shape, dimension=1)
    out_ref[...] = jnp.where(col == output_dim, rew, logits)


# ----------------------------------------------------------------------------
# Wrapper: tiling, padding, pallas_call
# ----------------------------------------------------------------------------
def _round_up(x, m):
    return ((x + m - 1) // m) * m


def _default_tile_b():
    """Per-generation batch tile (keeps double-buffered blocks well inside VMEM)."""
    try:
        kind = jax.devices()[0].device_kind.lower()
    except Exception:
        return 2048
    if "v6" in kind:
        return 4096          # 128 MiB physical VMEM; ~14 MiB used at this tile
    return 2048              # v5e (16 MiB scoped default) / v7x (64 MiB physical)


def prepare_params(params, obs_dim, act_dim, *, matmul_dtype=jnp.bfloat16):
    """Zero-pad hidden/output widths to 128 lanes, split fc1 into obs/act streams,
    cast matmul weights to bf16 (f32 accumulation in-kernel). Biases stay f32."""
    def pad2(w, rows, cols):
        return jnp.zeros((rows, cols), jnp.float32).at[:w.shape[0], :w.shape[1]].set(w)

    w1 = params["w1"]                                   # (obs_dim + act_dim, hidden)
    return {
        "w1o": pad2(w1[:obs_dim], obs_dim, HIDDEN_PAD).astype(matmul_dtype),
        "w1a": pad2(w1[obs_dim:], act_dim, HIDDEN_PAD).astype(matmul_dtype),
        "w2":  pad2(params["w2"], HIDDEN_PAD, HIDDEN_PAD).astype(matmul_dtype),
        "wo":  pad2(params["wo"], HIDDEN_PAD, OUT_PAD).astype(matmul_dtype),
        "b1":  pad2(params["b1"], 1, HIDDEN_PAD),
        "b2":  pad2(params["b2"], 1, HIDDEN_PAD),
        "bo":  pad2(params["bo"], 1, OUT_PAD),
        "matmul_dtype": matmul_dtype,
    }


def _run_disc_kernel(obss, acts, prepped, output_dim, tile_b=None):
    B, obs_dim = obss.shape
    act_dim = acts.shape[1]
    mm_dtype = prepped["matmul_dtype"]

    if tile_b is None:
        tile_b = _default_tile_b()
    tile_b = min(tile_b, _round_up(B, 8))           # keep small batches cheap
    b_padded = _round_up(B, tile_b)                 # pad batch: no masked last tile
    grid = (b_padded // tile_b,)

    obss_in = obss.astype(mm_dtype)                 # bf16 halves HBM traffic
    acts_in = acts.astype(jnp.float32)              # f32 for faithful reward math
    if b_padded != B:                               # only copy when actually needed
        obss_in = jnp.zeros((b_padded, obs_dim), mm_dtype).at[:B].set(obss_in)
        acts_in = jnp.zeros((b_padded, act_dim), jnp.float32).at[:B].set(acts_in)

    def batch_spec(d):
        return pl.BlockSpec((tile_b, d), lambda i: (i, 0))

    def const_spec(shape):
        return pl.BlockSpec(shape, lambda i: (0, 0))

    itemsize = jnp.dtype(mm_dtype).itemsize
    flops = 2 * b_padded * (obs_dim * HIDDEN_PAD + act_dim * HIDDEN_PAD
                            + HIDDEN_PAD * HIDDEN_PAD + HIDDEN_PAD * OUT_PAD)
    bytes_accessed = (b_padded * obs_dim * itemsize                      # obs
                      + b_padded * act_dim * 4                           # act (f32)
                      + b_padded * OUT_PAD * 4                           # output
                      + (obs_dim + act_dim + HIDDEN_PAD) * HIDDEN_PAD * itemsize
                      + HIDDEN_PAD * OUT_PAD * itemsize
                      + (2 * HIDDEN_PAD + OUT_PAD) * 4)                  # biases

    kernel = functools.partial(_disc_kernel, output_dim=output_dim)
    out = pl.pallas_call(
        kernel,
        out_shape=jax.ShapeDtypeStruct((b_padded, OUT_PAD), jnp.float32),
        grid=grid,
        in_specs=[
            batch_spec(obs_dim),
            batch_spec(act_dim),
            const_spec(prepped["w1o"].shape),
            const_spec(prepped["w1a"].shape),
            const_spec(prepped["b1"].shape),
            const_spec(prepped["w2"].shape),
            const_spec(prepped["b2"].shape),
            const_spec(prepped["wo"].shape),
            const_spec(prepped["bo"].shape),
        ],
        out_specs=pl.BlockSpec((tile_b, OUT_PAD), lambda i: (i, 0)),
        compiler_params=pltpu.CompilerParams(
            dimension_semantics=("parallel",),
            vmem_limit_bytes=48 * 1024 * 1024,
        ),
        cost_estimate=pl.CostEstimate(
            flops=flops, transcendentals=0, bytes_accessed=bytes_accessed),
    )(obss_in, acts_in,
      prepped["w1o"], prepped["w1a"], prepped["b1"],
      prepped["w2"], prepped["b2"],
      prepped["wo"], prepped["bo"])

    logits = out[:B, :output_dim]          # (B, output_dim)
    rews = out[:B, output_dim]             # (B,)
    return logits, rews


# ----------------------------------------------------------------------------
# RunningMeanStd (rl_sandbox semantics: Welford combine, unbiased var,
# normalize clamps to [-5, 5] and maps NaN -> 0)
# ----------------------------------------------------------------------------
def rms_init(shape):
    return {
        "mean": jnp.zeros(shape, jnp.float32),
        "var": jnp.ones(shape, jnp.float32),
        "count": jnp.asarray(1e-4, jnp.float32),
        "epsilon": 1e-4,
    }


def rms_update(rms, x):
    # TODO(synk): ddof=1 matches torch.var(unbiased=True) but yields NaN for a
    # single-element batch; callers must use batch_size >= 2 per update.
    batch_mean = jnp.mean(x, axis=0)
    batch_var = jnp.var(x, axis=0, ddof=1)
    batch_count = x.shape[0]

    delta = batch_mean - rms["mean"]
    tot = rms["count"] + batch_count
    new_mean = rms["mean"] + delta * batch_count / tot
    m_a = rms["var"] * rms["count"]
    m_b = batch_var * batch_count
    m2 = m_a + m_b + delta ** 2 * rms["count"] * batch_count / tot
    new_var = m2 / tot
    return {"mean": new_mean, "var": new_var, "count": tot, "epsilon": rms["epsilon"]}


def rms_normalize(rms, x):
    z = (x - rms["mean"]) / jnp.sqrt(rms["var"] + rms["epsilon"])
    z = jnp.clip(z, -5.0, 5.0)
    return jnp.where(jnp.isnan(z), 0.0, z)


# ----------------------------------------------------------------------------
# Forward pass (mirrors the PyTorch module)
# ----------------------------------------------------------------------------
def forward(prepped, state, obss, acts,
            output_dim, handcraft_indices, trainable_indices, tile_b=None):
    batch_size = obss.shape[0]
    obss2 = obss.reshape(batch_size, -1).astype(jnp.float32)
    acts2 = acts.reshape(batch_size, -1).astype(jnp.float32)

    logits, rews = _run_disc_kernel(obss2, acts2, prepped, output_dim, tile_b=tile_b)

    # RunningMeanStd update on the trainable logits.
    state["trainable_logits_rms"] = rms_update(state["trainable_logits_rms"], logits)
    trainable_mean = jnp.mean(state["trainable_logits_rms"]["mean"])
    trainable_var = jnp.mean(state["trainable_logits_rms"]["var"])
    eps = state["trainable_logits_rms"]["epsilon"]

    true_output_dim = output_dim + len(handcraft_indices)

    # Assemble full_out column-by-column (no zeros + scatter pass).
    cols = {}
    for j, idx in enumerate(trainable_indices):
        cols[idx] = logits[:, j]
    for list_index, idx in enumerate(handcraft_indices):
        key = f"handcraft_rms_{list_index}"
        state[key] = rms_update(state[key], rews)
        rews_norm = rms_normalize(state[key], rews)
        cols[idx] = rews_norm * jnp.sqrt(trainable_var + eps) + trainable_mean

    full_out = jnp.stack([cols[i] for i in range(true_output_dim)], axis=-1)
    return full_out, state


# ----------------------------------------------------------------------------
# Deterministic parameter initialization (torch.nn.Linear layout transposed:
# W stored as (in_features, out_features) so the kernel does x @ W + b)
# ----------------------------------------------------------------------------
def init_params(key, in_dim, hidden, output_dim):
    k1, k2, k3 = jax.random.split(key, 3)
    s = 0.1
    return {
        "w1": s * jax.random.normal(k1, (in_dim, hidden), jnp.float32),
        "b1": jnp.zeros((1, hidden), jnp.float32),
        "w2": s * jax.random.normal(k2, (hidden, hidden), jnp.float32),
        "b2": jnp.zeros((1, hidden), jnp.float32),
        "wo": s * jax.random.normal(k3, (hidden, output_dim), jnp.float32),
        "bo": jnp.zeros((1, output_dim), jnp.float32),
    }


if __name__ == "__main__":
    # Small shapes consistent with the module:
    #   obs_dim=12, action_dim=4, hidden=32, output_dim=3,
    #   handcraft_rewards = {1: reward_fn} -> true_output_dim = 4
    B, OBS_DIM, ACT_DIM, HIDDEN, OUTPUT_DIM = 2, 12, 4, 32, 3
    handcraft_indices = [1]
    true_output_dim = OUTPUT_DIM + len(handcraft_indices)
    trainable_indices = sorted(set(range(true_output_dim)) ^ set(handcraft_indices))

    key = jax.random.PRNGKey(0)
    k_obs, k_act, k_par = jax.random.split(key, 3)
    obss = jax.random.normal(k_obs, (B, OBS_DIM), jnp.float32)
    acts = jax.random.normal(k_act, (B, ACT_DIM), jnp.float32)

    raw_params = init_params(k_par, OBS_DIM + ACT_DIM, HIDDEN, OUTPUT_DIM)
    prepped = prepare_params(raw_params, OBS_DIM, ACT_DIM)

    state = {"trainable_logits_rms": rms_init((OUTPUT_DIM,)),
             "handcraft_rms_0": rms_init((1,))}

    full_out, state = forward(prepped, state, obss, acts,
                              OUTPUT_DIM, handcraft_indices, trainable_indices)
    jax.block_until_ready(full_out)
    assert full_out.shape == (B, true_output_dim)
    assert bool(jnp.all(jnp.isfinite(full_out)))
    print("KERNEL_OK")
</pallas_src>

<mosaic_0001>
module attributes {stable_mosaic.version = 11 : i64} {
  func.func @_disc_kernel(%arg0: i32, %arg1: memref<8x12xbf16, #tpu.memory_space<vmem>>, %arg2: memref<8x4xf32, #tpu.memory_space<vmem>>, %arg3: memref<12x128xbf16, #tpu.memory_space<vmem>>, %arg4: memref<4x128xbf16, #tpu.memory_space<vmem>>, %arg5: memref<1x128xf32, #tpu.memory_space<vmem>>, %arg6: memref<128x128xbf16, #tpu.memory_space<vmem>>, %arg7: memref<1x128xf32, #tpu.memory_space<vmem>>, %arg8: memref<128x128xbf16, #tpu.memory_space<vmem>>, %arg9: memref<1x128xf32, #tpu.memory_space<vmem>>, %arg10: memref<8x128xf32, #tpu.memory_space<vmem>>) attributes {dimension_semantics = [#tpu.dimension_semantics<parallel>], iteration_bounds = array<i64: 1>, scalar_prefetch = 0 : i64, scratch_operands = 0 : i64, tpu.core_type = #tpu.core_type<tc>, window_params = [{transform_indices = @transform_0, window_bounds = array<i64: 8, 12>}, {transform_indices = @transform_1, window_bounds = array<i64: 8, 4>}, {pipeline_mode = #tpu.pipeline_mode<synchronous>, transform_indices = @transform_2, window_bounds = array<i64: 12, 128>}, {pipeline_mode = #tpu.pipeline_mode<synchronous>, transform_indices = @transform_3, window_bounds = array<i64: 4, 128>}, {pipeline_mode = #tpu.pipeline_mode<synchronous>, transform_indices = @transform_4, window_bounds = array<i64: 1, 128>}, {pipeline_mode = #tpu.pipeline_mode<synchronous>, transform_indices = @transform_5, window_bounds = array<i64: 128, 128>}, {pipeline_mode = #tpu.pipeline_mode<synchronous>, transform_indices = @transform_6, window_bounds = array<i64: 1, 128>}, {pipeline_mode = #tpu.pipeline_mode<synchronous>, transform_indices = @transform_7, window_bounds = array<i64: 128, 128>}, {pipeline_mode = #tpu.pipeline_mode<synchronous>, transform_indices = @transform_8, window_bounds = array<i64: 1, 128>}, {transform_indices = @transform_9, window_bounds = array<i64: 8, 128>}]} {
    %c0 = arith.constant 0 : index
    %c0_0 = arith.constant 0 : index
    %0 = vector.load %arg1[%c0, %c0_0] : memref<8x12xbf16, #tpu.memory_space<vmem>>, vector<8x12xbf16>
    %c0_1 = arith.constant 0 : index
    %c0_2 = arith.constant 0 : index
    %1 = vector.load %arg2[%c0_1, %c0_2] : memref<8x4xf32, #tpu.memory_space<vmem>>, vector<8x4xf32>
    %c0_3 = arith.constant 0 : index
    %c0_4 = arith.constant 0 : index
    %2 = vector.load %arg3[%c0_3, %c0_4] : memref<12x128xbf16, #tpu.memory_space<vmem>>, vector<12x128xbf16>
    %cst = arith.constant dense<0.000000e+00> : vector<8x128xf32>
    %3 = tpu.matmul %0, %2, %cst {dimension_numbers = #tpu.dot_dimension_numbers<[1], [0], [0], [1], [0, 0, 1, 1], [], []>} : vector<8x12xbf16>, vector<12x128xbf16>, vector<8x128xf32> -> vector<8x128xf32>
    %4 = arith.truncf %1 : vector<8x4xf32> to vector<8x4xbf16>
    %c0_5 = arith.constant 0 : index
    %c0_6 = arith.constant 0 : index
    %5 = vector.load %arg4[%c0_5, %c0_6] : memref<4x128xbf16, #tpu.memory_space<vmem>>, vector<4x128xbf16>
    %cst_7 = arith.constant dense<0.000000e+00> : vector<8x128xf32>
    %6 = tpu.matmul %4, %5, %cst_7 {dimension_numbers = #tpu.dot_dimension_numbers<[1], [0], [0], [1], [0, 0, 1, 1], [], []>} : vector<8x4xbf16>, vector<4x128xbf16>, vector<8x128xf32> -> vector<8x128xf32>
    %7 = arith.addf %3, %6 : vector<8x128xf32>
    %c0_8 = arith.constant 0 : index
    %c0_9 = arith.constant 0 : index
    %8 = vector.load %arg5[%c0_8, %c0_9] : memref<1x128xf32, #tpu.memory_space<vmem>>, vector<1x128xf32>
    %9 = vector.broadcast %8 : vector<1x128xf32> to vector<8x128xf32>
    %10 = arith.addf %7, %9 : vector<8x128xf32>
    %cst_10 = arith.constant 0.000000e+00 : f32
    %11 = vector.broadcast %cst_10 : f32 to vector<8x128xf32>
    %12 = arith.maximumf %10, %11 : vector<8x128xf32>
    %13 = arith.truncf %12 : vector<8x128xf32> to vector<8x128xbf16>
    %c0_11 = arith.constant 0 : index
    %c0_12 = arith.constant 0 : index
    %14 = vector.load %arg6[%c0_11, %c0_12] : memref<128x128xbf16, #tpu.memory_space<vmem>>, vector<128x128xbf16>
    %cst_13 = arith.constant dense<0.000000e+00> : vector<8x128xf32>
    %15 = tpu.matmul %13, %14, %cst_13 {dimension_numbers = #tpu.dot_dimension_numbers<[1], [0], [0], [1], [0, 0, 1, 1], [], []>} : vector<8x128xbf16>, vector<128x128xbf16>, vector<8x128xf32> -> vector<8x128xf32>
    %c0_14 = arith.constant 0 : index
    %c0_15 = arith.constant 0 : index
    %16 = vector.load %arg7[%c0_14, %c0_15] : memref<1x128xf32, #tpu.memory_space<vmem>>, vector<1x128xf32>
    %17 = vector.broadcast %16 : vector<1x128xf32> to vector<8x128xf32>
    %18 = arith.addf %15, %17 : vector<8x128xf32>
    %cst_16 = arith.constant 0.000000e+00 : f32
    %19 = vector.broadcast %cst_16 : f32 to vector<8x128xf32>
    %20 = arith.maximumf %18, %19 : vector<8x128xf32>
    %21 = arith.truncf %20 : vector<8x128xf32> to vector<8x128xbf16>
    %c0_17 = arith.constant 0 : index
    %c0_18 = arith.constant 0 : index
    %22 = vector.load %arg8[%c0_17, %c0_18] : memref<128x128xbf16, #tpu.memory_space<vmem>>, vector<128x128xbf16>
    %cst_19 = arith.constant dense<0.000000e+00> : vector<8x128xf32>
    %23 = tpu.matmul %21, %22, %cst_19 {dimension_numbers = #tpu.dot_dimension_numbers<[1], [0], [0], [1], [0, 0, 1, 1], [], []>} : vector<8x128xbf16>, vector<128x128xbf16>, vector<8x128xf32> -> vector<8x128xf32>
    %c0_20 = arith.constant 0 : index
    %c0_21 = arith.constant 0 : index
    %24 = vector.load %arg9[%c0_20, %c0_21] : memref<1x128xf32, #tpu.memory_space<vmem>>, vector<1x128xf32>
    %25 = vector.broadcast %24 : vector<1x128xf32> to vector<8x128xf32>
    %26 = arith.addf %23, %25 : vector<8x128xf32>
    %27 = arith.mulf %1, %1 : vector<8x4xf32>
    %cst_22 = arith.constant dense<0.000000e+00> : vector<8xf32>
    %28 = vector.multi_reduction <add>, %27, %cst_22 [1] : vector<8x4xf32> to vector<8xf32>
    %29 = vector.shape_cast %28 : vector<8xf32> to vector<8x1xf32>
    %cst_23 = arith.constant 0.000000e+00 : f32
    %30 = vector.broadcast %cst_23 : f32 to vector<8x1xf32>
    %31 = arith.subf %30, %29 : vector<8x1xf32>
    %32 = tpu.iota {dimensions = array<i32: 1>} : vector<8x128xi32>
    %c3_i32 = arith.constant 3 : i32
    %33 = vector.broadcast %c3_i32 : i32 to vector<8x128xi32>
    %34 = arith.cmpi eq, %32, %33 : vector<8x128xi32>
    %35 = vector.shape_cast %31 : vector<8x1xf32> to vector<8x1xf32>
    %36 = vector.broadcast %35 : vector<8x1xf32> to vector<8x128xf32>
    %37 = arith.select %34, %36, %26 : vector<8x128xi1>, vector<8x128xf32>
    %c0_24 = arith.constant 0 : index
    %c0_25 = arith.constant 0 : index
    %38 = vector.load %arg10[%c0_24, %c0_25] : memref<8x128xf32, #tpu.memory_space<vmem>>, vector<8x128xf32>
    tpu.vector_store %arg10[%c0_24, %c0_25], %37 {strides = array<i32>} : memref<8x128xf32, #tpu.memory_space<vmem>>, vector<8x128xf32>,
    return
  }
  func.func @transform_0(%arg0: i32) -> (i32, i32) {
    %c0_i32 = arith.constant 0 : i32
    %c0_i32_0 = arith.constant 0 : i32
    return %arg0, %c0_i32 : i32, i32
  }
  func.func @transform_1(%arg0: i32) -> (i32, i32) {
    %c0_i32 = arith.constant 0 : i32
    %c0_i32_0 = arith.constant 0 : i32
    return %arg0, %c0_i32 : i32, i32
  }
  func.func @transform_2(%arg0: i32) -> (i32, i32) {
    %c0_i32 = arith.constant 0 : i32
    %c0_i32_0 = arith.constant 0 : i32
    %c0_i32_1 = arith.constant 0 : i32
    return %c0_i32, %c0_i32_0 : i32, i32
  }
  func.func @transform_3(%arg0: i32) -> (i32, i32) {
    %c0_i32 = arith.constant 0 : i32
    %c0_i32_0 = arith.constant 0 : i32
    %c0_i32_1 = arith.constant 0 : i32
    return %c0_i32, %c0_i32_0 : i32, i32
  }
  func.func @transform_4(%arg0: i32) -> (i32, i32) {
    %c0_i32 = arith.constant 0 : i32
    %c0_i32_0 = arith.constant 0 : i32
    %c0_i32_1 = arith.constant 0 : i32
    return %c0_i32, %c0_i32_0 : i32, i32
  }
  func.func @transform_5(%arg0: i32) -> (i32, i32) {
    %c0_i32 = arith.constant 0 : i32
    %c0_i32_0 = arith.constant 0 : i32
    %c0_i32_1 = arith.constant 0 : i32
    return %c0_i32, %c0_i32_0 : i32, i32
  }
  func.func @transform_6(%arg0: i32) -> (i32, i32) {
    %c0_i32 = arith.constant 0 : i32
    %c0_i32_0 = arith.constant 0 : i32
    %c0_i32_1 = arith.constant 0 : i32
    return %c0_i32, %c0_i32_0 : i32, i32
  }
  func.func @transform_7(%arg0: i32) -> (i32, i32) {
    %c0_i32 = arith.constant 0 : i32
    %c0_i32_0 = arith.constant 0 : i32
    %c0_i32_1 = arith.constant 0 : i32
    return %c0_i32, %c0_i32_0 : i32, i32
  }
  func.func @transform_8(%arg0: i32) -> (i32, i32) {
    %c0_i32 = arith.constant 0 : i32
    %c0_i32_0 = arith.constant 0 : i32
    %c0_i32_1 = arith.constant 0 : i32
    return %c0_i32, %c0_i32_0 : i32, i32
  }
  func.func @transform_9(%arg0: i32) -> (i32, i32) {
    %c0_i32 = arith.constant 0 : i32
    %c0_i32_0 = arith.constant 0 : i32
    return %arg0, %c0_i32 : i32, i32
  }
}

</mosaic_0001>

<llo_original>
// kernel: tpu_custom_call.1
$region0: #{tpu_custom_call.1}
  #allocation0 [shape = 'u32[]', space=smem, size = 0x4, offset = 0x4, fixed_abs, tag = 'smem constant byte address 0x4 - core index']
  #allocation1 [shape = 'u32[72,128]{1,0:T(1,128)}', space=vmem, size = 0x9000, scoped, tag = 'internal scratch']
  %s0 = inlined_call_operand.vmem [shape: bf16[8,12], index: 0, kind: input, shape index: {}]
  %s1 = inlined_call_operand.vmem [shape: f32[8,4], index: 1, kind: input, shape index: {}]
  %s2 = inlined_call_operand.vmem [shape: bf16[12,128], index: 2, kind: input, shape index: {}]
  %s3 = inlined_call_operand.vmem [shape: bf16[4,128], index: 3, kind: input, shape index: {}]
  %s4 = inlined_call_operand.vmem [shape: f32[1,128], index: 4, kind: input, shape index: {}]
  %s5 = inlined_call_operand.hbm [shape: bf16[128,128], index: 5, kind: input, shape index: {}]
  %s6 = inlined_call_operand.vmem [shape: f32[1,128], index: 6, kind: input, shape index: {}]
  %s7 = inlined_call_operand.hbm [shape: bf16[128,128], index: 7, kind: input, shape index: {}]
  %s8 = inlined_call_operand.vmem [shape: f32[1,128], index: 8, kind: input, shape index: {}]
  %s9 = inlined_call_operand.hbm [shape: f32[8,128], index: 9, kind: output, shape index: {}]
  %s10 = sld [smem:[#allocation0]]
  $region54: #{tpu_custom_call.1} parent=0
    _
  %s12 = ssub.s32 1, %s10
  %s13 = scalar_select 0, %s12, %s10
  $region1: #{tpu_custom_call.1} parent=0
    #allocation2 [shape = 'u8[32768]{0}', space=vmem, size = 0x8000, scoped, tag = 'input window, operand 5, single buffered']
    #allocation3 [shape = 's32[1]{0}', space=sflag, size = 0x4, scoped, tag = 'scoped memory for tpu_custom_call.1']
    #allocation4 [shape = 's32[1]{0}', space=sflag, size = 0x4, scoped, tag = 'scoped memory for tpu_custom_call.1']
    #allocation5 [shape = 'u8[32768]{0}', space=vmem, size = 0x8000, scoped, tag = 'input window, operand 7, single buffered']
    #allocation6 [shape = 's32[1]{0}', space=sflag, size = 0x4, scoped, tag = 'scoped memory for tpu_custom_call.1']
    #allocation7 [shape = 'u8[4096]{0}', space=vmem, size = 0x1000, scoped, tag = 'output window, operand 0, single buffered']
    %14 = vsyncpa [#allocation3], 0
    %15 = vsyncpa [#allocation6], 0
    %16 = vsyncpa [#allocation4], 0
    // Predicated region
    $region2: #{tpu_custom_call.1} parent=1 // pred_check
      _
    $region3: #{tpu_custom_call.1} parent=1 // pred_check_branch
      %18 = sbr.rel (0) target = $region5
    $region4: #{tpu_custom_call.1} parent=1 // pred_region
      _
    $region5: #{tpu_custom_call.1} parent=1 // pred_fallthru
      _
    // Predicated region
    $region6: #{tpu_custom_call.1} parent=1 // pred_check
      _
    $region7: #{tpu_custom_call.1} parent=1 // pred_check_branch
      %20 = sbr.rel (0) target = $region9
    $region8: #{tpu_custom_call.1} parent=1 // pred_region
      _
    $region9: #{tpu_custom_call.1} parent=1 // pred_fallthru
      _
    // Predicated region
    $region10: #{tpu_custom_call.1} parent=1 // pred_check
      _
    $region11: #{tpu_custom_call.1} parent=1 // pred_check_branch
      %22 = sbr.rel (0) target = $region13
    $region12: #{tpu_custom_call.1} parent=1 // pred_region
      _
    $region13: #{tpu_custom_call.1} parent=1 // pred_fallthru
      _
    // Predicated region
    $region14: #{tpu_custom_call.1} parent=1 // pred_check
      _
    $region15: #{tpu_custom_call.1} parent=1 // pred_check_branch
      %24 = sbr.rel (0) target = $region17
    $region16: #{tpu_custom_call.1} parent=1 // pred_region
      _
    $region17: #{tpu_custom_call.1} parent=1 // pred_fallthru
      _
    // Predicated region
    $region18: #{tpu_custom_call.1} parent=1 // pred_check
      _
    $region19: #{tpu_custom_call.1} parent=1 // pred_check_branch
      %26 = sbr.rel (0) target = $region21
    $region20: #{tpu_custom_call.1} parent=1 // pred_region
      _
    $region21: #{tpu_custom_call.1} parent=1 // pred_fallthru
      _
    // Predicated region
    $region22: #{tpu_custom_call.1} parent=1 // pred_check
      _
    $region23: #{tpu_custom_call.1} parent=1 // pred_check_branch
      %28 = sbr.rel (0) target = $region25
    $region24: #{tpu_custom_call.1} parent=1 // pred_region
      %30 = vsyncadd [#allocation3], 0
      %s31 = sshll.u32 %s5, 4
      %s32 = int_to_ptr.hbm [resolvable:$true] %s31
      %s33 = sshll.u32 [#allocation2], 4
      %s34 = int_to_ptr.vmem [resolvable:$true] %s33
      %39 = dma.hbm_to_vmem [thread:$0]  %s32, 1024, %s34, [#allocation3], 64, 64, 4
    $region25: #{tpu_custom_call.1} parent=1 // pred_fallthru
      _
    // Predicated region
    $region26: #{tpu_custom_call.1} parent=1 // pred_check
      _
    $region27: #{tpu_custom_call.1} parent=1 // pred_check_branch
      %41 = sbr.rel (0) target = $region29
    $region28: #{tpu_custom_call.1} parent=1 // pred_region
      _
    $region29: #{tpu_custom_call.1} parent=1 // pred_fallthru
      _
    // Predicated region
    $region30: #{tpu_custom_call.1} parent=1 // pred_check
      _
    $region31: #{tpu_custom_call.1} parent=1 // pred_check_branch
      %43 = sbr.rel (0) target = $region33
    $region32: #{tpu_custom_call.1} parent=1 // pred_region
      %45 = vsyncadd [#allocation6], 0
      %s46 = sshll.u32 %s7, 4
      %s47 = int_to_ptr.hbm [resolvable:$true] %s46
      %s48 = sshll.u32 [#allocation5], 4
      %s49 = int_to_ptr.vmem [resolvable:$true] %s48
      %54 = dma.hbm_to_vmem [thread:$0]  %s47, 1024, %s49, [#allocation6], 64, 64, 4
    $region33: #{tpu_custom_call.1} parent=1 // pred_fallthru
      _
    // Predicated region
    $region34: #{tpu_custom_call.1} parent=1 // pred_check
      _
    $region35: #{tpu_custom_call.1} parent=1 // pred_check_branch
      %56 = sbr.rel (0) target = $region37
    $region36: #{tpu_custom_call.1} parent=1 // pred_region
      _
    $region37: #{tpu_custom_call.1} parent=1 // pred_fallthru
      _
    // Predicated region
    $region38: #{tpu_custom_call.1} parent=1 // pred_check
      _
    $region39: #{tpu_custom_call.1} parent=1 // pred_check_branch
      %58 = sbr.rel (0) target = $region41
    $region40: #{tpu_custom_call.1} parent=1 // pred_region
      %60 = dma.done [#allocation3], 1024
    $region41: #{tpu_custom_call.1} parent=1 // pred_fallthru
      _
    // Predicated region
    $region42: #{tpu_custom_call.1} parent=1 // pred_check
      _
    $region43: #{tpu_custom_call.1} parent=1 // pred_check_branch
      %62 = sbr.rel (0) target = $region45
    $region44: #{tpu_custom_call.1} parent=1 // pred_region
      %64 = dma.done [#allocation6], 1024
    $region45: #{tpu_custom_call.1} parent=1 // pred_fallthru
      _
    %v66 = vld [vmem:[%s0] sm:$0xf]
    %v67 = vld [vmem:[%s1] sm:$0xff]
    %v68 = vld [vmem:[%s2] sm:$0xf]
    %v69 = vld [vmem:[%s2 + $0x4] sm:$0x3]
    %v70 = vpack.c.bf16 %v67, %v67
    %v71 = vld [vmem:[%s3] sm:$0x3]
    %vm72 = vcmask 31744
    %v74 = vsel %vm72, %v70, 0
    %vm76 = vcmask 1041408
    %v78 = vsel %vm76, %v71, 0
    %80 = vmatpush.bf16.msra.mxu0 0
    %81 = vmatpush.bf16.msra.mxu0 0
    %82 = vmatpush.bf16.msra.mxu0 0
    %83 = vmatpush.bf16.msra.mxu0 0
    %84 = vmatpush.bf16.msra.mxu0 0
    %85 = vmatpush.bf16.msra.mxu0 0
    %86 = vmatpush.bf16.msra.mxu0 0
    %87 = vmatpush.bf16.msra.mxu0 %v78
    %88 = vmatmul.bf16.gmra.mxu0 %v74
    %v89 = vpop.f32.mrf.mxu0
    %v90 = vadd.f32 0.0, %v89
    %v91 = vpop.f32.mrf.mxu0
    %92 = vdwg.mxu0
    %v95 = vunpack.c.l.b16 %v68
    %v96 = vunpack.c.l.b16 %v69
    %v97 = vpack.c.b16 %v96, %v95
    %vm98 = vcmask 97280
    %v100 = vsel %vm98, %v66, 0
    %vm102 = vcmask 1045504
    %v104 = vsel %vm102, %v97, 0
    %106 = vmatpush.bf16.msra.mxu0 0
    %107 = vmatpush.bf16.msra.mxu0 0
    %108 = vmatpush.bf16.msra.mxu0 0
    %109 = vmatpush.bf16.msra.mxu0 0
    %110 = vmatpush.bf16.msra.mxu0 0
    %111 = vmatpush.bf16.msra.mxu0 0
    %112 = vmatpush.bf16.msra.mxu0 0
    %113 = vmatpush.bf16.msra.mxu0 %v104
    %114 = vmatmul.bf16.gmra.mxu0 %v100
    %v115 = vpop.f32.mrf.mxu0
    %v116 = vadd.f32 %v90, %v115
    %v117 = vpop.f32.mrf.mxu0
    %118 = vdwg.mxu0
    %v119 = vld [vmem:[%s4] sm:$0x1]
    %v121 = vperm.slane %v119, 0
    %v123 = vadd.f32 %v116, %v121
    %v124 = vmax.f32 %v123, 0.0
    %v125 = vpack.c.bf16 %v124, %v124
    %v126 = vld [vmem:[#allocation2] sm:$0xf]
    %v127 = vld [vmem:[#allocation2 + $0x4] sm:$0xf]
    %v128 = vld [vmem:[#allocation2 + $0x8] sm:$0xf]
    %v129 = vld [vmem:[#allocation2 + $0xc] sm:$0xf]
    %v130 = vld [vmem:[#allocation2 + $0x10] sm:$0xf]
    %v131 = vld [vmem:[#allocation2 + $0x14] sm:$0xf]
    %v132 = vld [vmem:[#allocation2 + $0x18] sm:$0xf]
    %v133 = vld [vmem:[#allocation2 + $0x1c] sm:$0xf]
    %v134 = vld [vmem:[#allocation2 + $0x20] sm:$0xf]
    %v135 = vld [vmem:[#allocation2 + $0x24] sm:$0xf]
    %v136 = vld [vmem:[#allocation2 + $0x28] sm:$0xf]
    %v137 = vld [vmem:[#allocation2 + $0x2c] sm:$0xf]
    %v138 = vld [vmem:[#allocation2 + $0x30] sm:$0xf]
    %v139 = vld [vmem:[#allocation2 + $0x34] sm:$0xf]
    %v140 = vld [vmem:[#allocation2 + $0x38] sm:$0xf]
    %v141 = vld [vmem:[#allocation2 + $0x3c] sm:$0xf]
    %v142 = vld [vmem:[%s6] sm:$0x1]
    %v144 = vperm.slane %v142, 0
    %v162 = vunpack.c.l.b16 %v126
    %v163 = vunpack.c.l.b16 %v127
    %v164 = vunpack.c.l.b16 %v128
    %v165 = vunpack.c.l.b16 %v129
    %v166 = vunpack.c.l.b16 %v130
    %v167 = vunpack.c.l.b16 %v131
    %v168 = vunpack.c.l.b16 %v132
    %v169 = vunpack.c.l.b16 %v133
    %v170 = vunpack.c.l.b16 %v134
    %v171 = vunpack.c.l.b16 %v135
    %v172 = vunpack.c.l.b16 %v136
    %v173 = vunpack.c.l.b16 %v137
    %v174 = vunpack.c.l.b16 %v138
    %v175 = vunpack.c.l.b16 %v139
    %v176 = vunpack.c.l.b16 %v140
    %v177 = vunpack.c.l.b16 %v141
    %v178 = vpack.c.b16 %v163, %v162
    %v179 = vpack.c.b16 %v165, %v164
    %v180 = vpack.c.b16 %v167, %v166
    %v181 = vpack.c.b16 %v169, %v168
    %v182 = vpack.c.b16 %v171, %v170
    %v183 = vpack.c.b16 %v173, %v172
    %v184 = vpack.c.b16 %v175, %v174
    %v185 = vpack.c.b16 %v177, %v176
    %194 = vmatpush.bf16.msra.mxu0 %v185
    %195 = vmatpush.bf16.msra.mxu0 %v184
    %196 = vmatpush.bf16.msra.mxu0 %v183
    %197 = vmatpush.bf16.msra.mxu0 %v182
    %198 = vmatpush.bf16.msra.mxu0 %v181
    %199 = vmatpush.bf16.msra.mxu0 %v180
    %200 = vmatpush.bf16.msra.mxu0 %v179
    %201 = vmatpush.bf16.msra.mxu0 %v178
    %202 = vmatmul.bf16.gmra.mxu0 %v125
    %v203 = vpop.f32.mrf.mxu0
    %v204 = vadd.f32 %v144, %v203
    %v205 = vpop.f32.mrf.mxu0
    %206 = vdwg.mxu0
    %v207 = vmax.f32 %v204, 0.0
    %v208 = vpack.c.bf16 %v207, %v207
    %v209 = vld [vmem:[#allocation5] sm:$0xf]
    %v210 = vld [vmem:[#allocation5 + $0x4] sm:$0xf]
    %v211 = vld [vmem:[#allocation5 + $0x8] sm:$0xf]
    %v212 = vld [vmem:[#allocation5 + $0xc] sm:$0xf]
    %v213 = vld [vmem:[#allocation5 + $0x10] sm:$0xf]
    %v214 = vld [vmem:[#allocation5 + $0x14] sm:$0xf]
    %v215 = vld [vmem:[#allocation5 + $0x18] sm:$0xf]
    %v216 = vld [vmem:[#allocation5 + $0x1c] sm:$0xf]
    %v217 = vld [vmem:[#allocation5 + $0x20] sm:$0xf]
    %v218 = vld [vmem:[#allocation5 + $0x24] sm:$0xf]
    %v219 = vld [vmem:[#allocation5 + $0x28] sm:$0xf]
    %v220 = vld [vmem:[#allocation5 + $0x2c] sm:$0xf]
    %v221 = vld [vmem:[#allocation5 + $0x30] sm:$0xf]
    %v222 = vld [vmem:[#allocation5 + $0x34] sm:$0xf]
    %v223 = vld [vmem:[#allocation5 + $0x38] sm:$0xf]
    %v224 = vld [vmem:[#allocation5 + $0x3c] sm:$0xf]
    %v225 = vld [vmem:[%s8] sm:$0x1]
    %v227 = vperm.slane %v225, 0
    %v245 = vunpack.c.l.b16 %v209
    %v246 = vunpack.c.l.b16 %v210
    %v247 = vunpack.c.l.b16 %v211
    %v248 = vunpack.c.l.b16 %v212
    %v249 = vunpack.c.l.b16 %v213
    %v250 = vunpack.c.l.b16 %v214
    %v251 = vunpack.c.l.b16 %v215
    %v252 = vunpack.c.l.b16 %v216
    %v253 = vunpack.c.l.b16 %v217
    %v254 = vunpack.c.l.b16 %v218
    %v255 = vunpack.c.l.b16 %v219
    %v256 = vunpack.c.l.b16 %v220
    %v257 = vunpack.c.l.b16 %v221
    %v258 = vunpack.c.l.b16 %v222
    %v259 = vunpack.c.l.b16 %v223
    %v260 = vunpack.c.l.b16 %v224
    %v261 = vpack.c.b16 %v246, %v245
    %v262 = vpack.c.b16 %v248, %v247
    %v263 = vpack.c.b16 %v250, %v249
    %v264 = vpack.c.b16 %v252, %v251
    %v265 = vpack.c.b16 %v254, %v253
    %v266 = vpack.c.b16 %v256, %v255
    %v267 = vpack.c.b16 %v258, %v257
    %v268 = vpack.c.b16 %v260, %v259
    %277 = vmatpush.bf16.msra.mxu0 %v268
    %278 = vmatpush.bf16.msra.mxu0 %v267
    %279 = vmatpush.bf16.msra.mxu0 %v266
    %280 = vmatpush.bf16.msra.mxu0 %v265
    %281 = vmatpush.bf16.msra.mxu0 %v264
    %282 = vmatpush.bf16.msra.mxu0 %v263
    %283 = vmatpush.bf16.msra.mxu0 %v262
    %284 = vmatpush.bf16.msra.mxu0 %v261
    %285 = vmatmul.bf16.gmra.mxu0 %v208
    %v286 = vpop.f32.mrf.mxu0
    %v287 = vadd.f32 %v227, %v286
    %v288 = vpop.f32.mrf.mxu0
    %289 = vdwg.mxu0
    %v290 = vmul.f32 %v67, %v67
    %v291 = vsel %vm72, %v290, 0.0
    %292 = vadd.xlane.f32.xlu0 %v291
    %v293 = vpop.xlane.xlu0 %292
    %v294 = vsub.f32 0.0, %v293
    %v295 = vlaneseq
    %v296 = vand.u32 %v295, 127
    %vm297 = vcmp.eq.s32.totalorder %v296, 3
    %v298 = vsel %vm297, %v294, %v287
    %299 = vst [vmem:[#allocation7] sm:$0xff] %v298
    // Predicated region
    $region46: #{tpu_custom_call.1} parent=1 // pred_check
      _
    $region47: #{tpu_custom_call.1} parent=1 // pred_check_branch
      %301 = sbr.rel (0) target = $region49
    $region48: #{tpu_custom_call.1} parent=1 // pred_region
      %303 = vsyncadd [#allocation4], 0
      %s305 = sshll.u32 [#allocation7], 4
      %s306 = int_to_ptr.vmem [resolvable:$true] %s305
      %s307 = sshll.u32 %s9, 4
      %s308 = int_to_ptr.hbm [resolvable:$true] %s307
      %310 = dma.vmem_to_hbm [thread:$0]  %s306, 128, %s308, [#allocation4]
    $region49: #{tpu_custom_call.1} parent=1 // pred_fallthru
      _
    // Predicated region
    $region50: #{tpu_custom_call.1} parent=1 // pred_check
      _
    $region51: #{tpu_custom_call.1} parent=1 // pred_check_branch
      %312 = sbr.rel (0) target = $region53
    $region52: #{tpu_custom_call.1} parent=1 // pred_region
      %314 = dma.done [#allocation4], 128
    $region53: #{tpu_custom_call.1} parent=1 // pred_fallthru
      _
    %315 = vsyncpa [#allocation3], 1
    %316 = vsyncpa [#allocation6], 1
    %317 = vsyncpa [#allocation4], 1

</llo_original>
